<compile_context>
chip_gen: v7x
topology: tpu7x:2x2x1
jax: 0.10.0
libtpu: 0.0.40
codegen_flags: <defaults>
</compile_context>

<pallas_src>
import functools

import jax
import jax.numpy as jnp
from jax.experimental import pallas as pl
from jax.experimental.pallas import tpu as pltpu

HEAD_PAD = 128  # each discrete head occupies its own 128-lane segment


# ----------------------------- Pallas kernel --------------------------------
def _imitation_kernel(head_specs,
                      state_ref, w1_ref, b1_ref, w2_ref, b2_ref,
                      wh_ref, bh_ref,
                      idx_ref, act_ref):
    # MLP trunk (MeanStdFilter already folded into w1/b1): MXU matmuls, f32 acc.
    x = state_ref[...]
    h = jnp.tanh(jnp.dot(x, w1_ref[...], preferred_element_type=jnp.float32)
                 + b1_ref[...])
    h = jnp.tanh(jnp.dot(h, w2_ref[...], preferred_element_type=jnp.float32)
                 + b2_ref[...])

    # All heads fused into one matmul; each head's 128-lane segment has -1e30
    # bias on its padded lanes so they can never win the argmax.
    logits = jnp.dot(h, wh_ref[...], preferred_element_type=jnp.float32) \
             + bh_ref[...]

    idx_cols, act_cols = [], []
    for i, (_count, a_min, step) in enumerate(head_specs):
        seg = logits[:, i * HEAD_PAD:(i + 1) * HEAD_PAD]      # whole vregs
        mx = jnp.max(seg, axis=-1, keepdims=True)
        iota = jax.lax.broadcasted_iota(jnp.int32, seg.shape, 1)
        cand = jnp.where(seg == mx, iota, jnp.int32(HEAD_PAD))
        idx = jnp.min(cand, axis=-1, keepdims=True)           # first occurrence
        idx_cols.append(idx)
        # actions_grid[idx] for a linspace grid == a_min + idx * step
        act_cols.append(jnp.float32(a_min)
                        + idx.astype(jnp.float32) * jnp.float32(step))
    idx_ref[...] = jnp.concatenate(idx_cols, axis=-1)
    act_ref[...] = jnp.concatenate(act_cols, axis=-1)


# ------------------------------- wrapper -------------------------------------
def imitation_forward(state, kernel_params, head_specs, *, tb=None):
    """Fused ImitationAgent forward (deterministic, discrete).

    state: (B, S) float32. kernel_params: output of prepare_kernel_params.
    Returns (idx (B, NH) int32, actions (B, NH) float32).
    """
    B, S = state.shape
    w1, b1, w2, b2, wh, bh = kernel_params
    H0, H1 = w1.shape[1], w2.shape[1]
    Dp = wh.shape[1]
    NH = len(head_specs)

    # Large batch tile: whole batch for small B, else 256 rows per grid step so
    # the ~0.35us per-step overhead is amortized and the MXU M-dim stays full.
    if tb is None:
        tb = B if B <= 256 else 256
    if tb >= B:
        tb, Bp = B, B                          # single-step grid, no padding
    else:
        tb = max(8, (tb // 8) * 8)             # sublane-aligned tile
        Bp = ((B + tb - 1) // tb) * tb         # pad batch to a tile multiple
    if Bp != B:
        state = jnp.pad(state, ((0, Bp - B), (0, 0)))

    kernel = functools.partial(_imitation_kernel, tuple(head_specs))

    grid_spec = pl.GridSpec(
        grid=(Bp // tb,),
        in_specs=[
            pl.BlockSpec((tb, S), lambda i: (i, 0)),    # state (batch tiled)
            pl.BlockSpec((S, H0), lambda i: (0, 0)),    # W1 (filter folded in)
            pl.BlockSpec((1, H0), lambda i: (0, 0)),    # b1
            pl.BlockSpec((H0, H1), lambda i: (0, 0)),   # W2
            pl.BlockSpec((1, H1), lambda i: (0, 0)),    # b2
            pl.BlockSpec((H1, Dp), lambda i: (0, 0)),   # packed head weights
            pl.BlockSpec((1, Dp), lambda i: (0, 0)),    # packed head biases
        ],
        out_specs=[
            pl.BlockSpec((tb, NH), lambda i: (i, 0)),   # argmax indices
            pl.BlockSpec((tb, NH), lambda i: (i, 0)),   # grid actions
        ],
    )

    idx, actions = pl.pallas_call(
        kernel,
        out_shape=(
            jax.ShapeDtypeStruct((Bp, NH), jnp.int32),
            jax.ShapeDtypeStruct((Bp, NH), jnp.float32),
        ),
        grid_spec=grid_spec,
        compiler_params=pltpu.CompilerParams(
            dimension_semantics=("parallel",)),
    )(state, w1, b1, w2, b2, wh, bh)

    if Bp != B:
        idx, actions = idx[:B], actions[:B]
    return idx, actions


# ------------------------------ param setup ----------------------------------
def init_raw_params(key, n_states, hidden_layers, head_sizes):
    """Deterministic synthetic parameters mirroring the PyTorch module."""
    def linear(k, fan_in, fan_out):
        kw, kb = jax.random.split(k)
        bound = 1.0 / jnp.sqrt(fan_in)
        w = jax.random.uniform(kw, (fan_in, fan_out), jnp.float32, -bound, bound)
        b = jax.random.uniform(kb, (1, fan_out), jnp.float32, -bound, bound)
        return w, b

    H0, H1 = hidden_layers
    keys = jax.random.split(key, 3 + len(head_sizes))
    km, ks = jax.random.split(keys[0])
    mean = jax.random.normal(km, (1, n_states), jnp.float32) * 0.1
    std = jax.random.uniform(ks, (1, n_states), jnp.float32, 0.5, 1.5)
    w1, b1 = linear(keys[1], n_states, H0)
    w2, b2 = linear(keys[2], H0, H1)
    heads = [linear(keys[3 + i], H1, d) for i, d in enumerate(head_sizes)]
    return (mean, std, w1, b1, w2, b2, heads)


def prepare_kernel_params(raw_params, eps=1e-8):
    """Fold MeanStdFilter into Linear1 and pack heads into 128-lane segments."""
    mean, std, w1, b1, w2, b2, heads = raw_params
    inv_std = 1.0 / jnp.maximum(std, eps)          # guard against std == 0
    w1f = w1 * inv_std.reshape(-1, 1)
    b1f = b1 - (mean * inv_std) @ w1

    w_cols, b_cols = [], []
    for wh, bh in heads:
        d = wh.shape[1]
        assert d <= HEAD_PAD, "head discretization must fit in one lane segment"
        w_cols.append(jnp.pad(wh, ((0, 0), (0, HEAD_PAD - d))))
        b_cols.append(jnp.pad(bh, ((0, 0), (0, HEAD_PAD - d)),
                              constant_values=-1e30))
    whp = jnp.concatenate(w_cols, axis=1)
    bhp = jnp.concatenate(b_cols, axis=1)
    return (w1f, b1f, w2, b2, whp, bhp)


def make_head_specs(bounds, discretizations):
    specs = []
    for (a_min, a_max), count in zip(bounds, discretizations):
        step = (a_max - a_min) / max(count - 1, 1)
        specs.append((int(count), float(a_min), float(step)))
    return tuple(specs)


def make_action_grids(bounds, discretizations):
    return [jnp.linspace(a_min, a_max, count, dtype=jnp.float32)
            for (a_min, a_max), count in zip(bounds, discretizations)]


# ------------------------------- reference -----------------------------------
def reference_forward(state, raw_params, grids, eps=1e-8):
    mean, std, w1, b1, w2, b2, heads = raw_params
    x = (state - mean) / jnp.maximum(std, eps)
    h = jnp.tanh(x @ w1 + b1)
    h = jnp.tanh(h @ w2 + b2)
    idxs, acts = [], []
    for (wh, bh), grid in zip(heads, grids):
        logits = h @ wh + bh
        idx = jnp.argmax(logits, axis=-1)
        idxs.append(idx.astype(jnp.int32))
        acts.append(grid[idx])
    return jnp.stack(idxs, axis=-1), jnp.stack(acts, axis=-1)


# --------------------------------- main ---------------------------------------
if __name__ == "__main__":
    cfg = {
        "n_inputs": 16,
        "hidden_layers": [32, 32],
        "discrete": True,
        "actions_discretizations": [15, 42],
        "actions_bounds": [(-6.0, 6.0), (-0.7, 0.7)],
    }
    B = 16
    head_sizes = cfg["actions_discretizations"]

    key = jax.random.PRNGKey(0)
    k_state, k_params = jax.random.split(key)
    state = jax.random.normal(k_state, (B, cfg["n_inputs"]), jnp.float32)

    raw_params = init_raw_params(k_params, cfg["n_inputs"],
                                 cfg["hidden_layers"], head_sizes)
    kparams = prepare_kernel_params(raw_params)
    head_specs = make_head_specs(cfg["actions_bounds"], head_sizes)
    grids = make_action_grids(cfg["actions_bounds"], head_sizes)

    ref_idx, ref_act = reference_forward(state, raw_params, grids)

    # 1) single-step grid (tb == B): preferred config for small batches.
    idx, actions = imitation_forward(state, kparams, head_specs)
    jax.block_until_ready((idx, actions))
    assert jnp.array_equal(idx, ref_idx)
    assert jnp.allclose(actions, ref_act, atol=1e-5, rtol=1e-5)

    # 2) tiled grid (tb=8 -> grid=(2,)): exercises batch tiling / megacore path.
    idx2, actions2 = imitation_forward(state, kparams, head_specs, tb=8)
    jax.block_until_ready((idx2, actions2))
    assert jnp.array_equal(idx2, ref_idx)
    assert jnp.allclose(actions2, ref_act, atol=1e-5, rtol=1e-5)

    # 3) ragged batch (B=12 with tb=8): exercises the padded final tile.
    idx3, actions3 = imitation_forward(state[:12], kparams, head_specs, tb=8)
    jax.block_until_ready((idx3, actions3))
    assert jnp.array_equal(idx3, ref_idx[:12])
    assert jnp.allclose(actions3, ref_act[:12], atol=1e-5, rtol=1e-5)

    # TODO(synk): stochastic sampling (Categorical.sample / MultivariateNormal)
    #             and the training-time running-stat update of MeanStdFilter
    #             are not kernelized; only the deterministic eval forward is.

    print("KERNEL_OK")
</pallas_src>

<mosaic_0001>
module attributes {stable_mosaic.version = 11 : i64} {
  func.func @_imitation_kernel(%arg0: i32, %arg1: memref<16x16xf32, #tpu.memory_space<vmem>>, %arg2: memref<16x32xf32, #tpu.memory_space<vmem>>, %arg3: memref<1x32xf32, #tpu.memory_space<vmem>>, %arg4: memref<32x32xf32, #tpu.memory_space<vmem>>, %arg5: memref<1x32xf32, #tpu.memory_space<vmem>>, %arg6: memref<32x256xf32, #tpu.memory_space<vmem>>, %arg7: memref<1x256xf32, #tpu.memory_space<vmem>>, %arg8: memref<16x2xi32, #tpu.memory_space<vmem>>, %arg9: memref<16x2xf32, #tpu.memory_space<vmem>>) attributes {dimension_semantics = [#tpu.dimension_semantics<parallel>], iteration_bounds = array<i64: 1>, scalar_prefetch = 0 : i64, scratch_operands = 0 : i64, tpu.core_type = #tpu.core_type<tc>, window_params = [{transform_indices = @transform_0, window_bounds = array<i64: 16, 16>}, {pipeline_mode = #tpu.pipeline_mode<synchronous>, transform_indices = @transform_1, window_bounds = array<i64: 16, 32>}, {pipeline_mode = #tpu.pipeline_mode<synchronous>, transform_indices = @transform_2, window_bounds = array<i64: 1, 32>}, {pipeline_mode = #tpu.pipeline_mode<synchronous>, transform_indices = @transform_3, window_bounds = array<i64: 32, 32>}, {pipeline_mode = #tpu.pipeline_mode<synchronous>, transform_indices = @transform_4, window_bounds = array<i64: 1, 32>}, {pipeline_mode = #tpu.pipeline_mode<synchronous>, transform_indices = @transform_5, window_bounds = array<i64: 32, 256>}, {pipeline_mode = #tpu.pipeline_mode<synchronous>, transform_indices = @transform_6, window_bounds = array<i64: 1, 256>}, {transform_indices = @transform_7, window_bounds = array<i64: 16, 2>}, {transform_indices = @transform_8, window_bounds = array<i64: 16, 2>}]} {
    %c0 = arith.constant 0 : index
    %c0_0 = arith.constant 0 : index
    %0 = vector.load %arg1[%c0, %c0_0] : memref<16x16xf32, #tpu.memory_space<vmem>>, vector<16x16xf32>
    %c0_1 = arith.constant 0 : index
    %c0_2 = arith.constant 0 : index
    %1 = vector.load %arg2[%c0_1, %c0_2] : memref<16x32xf32, #tpu.memory_space<vmem>>, vector<16x32xf32>
    %cst = arith.constant dense<0.000000e+00> : vector<16x32xf32>
    %2 = tpu.matmul %0, %1, %cst {dimension_numbers = #tpu.dot_dimension_numbers<[1], [0], [0], [1], [0, 0, 1, 1], [], []>} : vector<16x16xf32>, vector<16x32xf32>, vector<16x32xf32> -> vector<16x32xf32>
    %c0_3 = arith.constant 0 : index
    %c0_4 = arith.constant 0 : index
    %3 = vector.load %arg3[%c0_3, %c0_4] : memref<1x32xf32, #tpu.memory_space<vmem>>, vector<1x32xf32>
    %4 = vector.broadcast %3 : vector<1x32xf32> to vector<16x32xf32>
    %5 = arith.addf %2, %4 : vector<16x32xf32>
    %6 = math.tanh %5 : vector<16x32xf32>
    %c0_5 = arith.constant 0 : index
    %c0_6 = arith.constant 0 : index
    %7 = vector.load %arg4[%c0_5, %c0_6] : memref<32x32xf32, #tpu.memory_space<vmem>>, vector<32x32xf32>
    %cst_7 = arith.constant dense<0.000000e+00> : vector<16x32xf32>
    %8 = tpu.matmul %6, %7, %cst_7 {dimension_numbers = #tpu.dot_dimension_numbers<[1], [0], [0], [1], [0, 0, 1, 1], [], []>} : vector<16x32xf32>, vector<32x32xf32>, vector<16x32xf32> -> vector<16x32xf32>
    %c0_8 = arith.constant 0 : index
    %c0_9 = arith.constant 0 : index
    %9 = vector.load %arg5[%c0_8, %c0_9] : memref<1x32xf32, #tpu.memory_space<vmem>>, vector<1x32xf32>
    %10 = vector.broadcast %9 : vector<1x32xf32> to vector<16x32xf32>
    %11 = arith.addf %8, %10 : vector<16x32xf32>
    %12 = math.tanh %11 : vector<16x32xf32>
    %c0_10 = arith.constant 0 : index
    %c0_11 = arith.constant 0 : index
    %13 = vector.load %arg6[%c0_10, %c0_11] : memref<32x256xf32, #tpu.memory_space<vmem>>, vector<32x256xf32>
    %cst_12 = arith.constant dense<0.000000e+00> : vector<16x256xf32>
    %14 = tpu.matmul %12, %13, %cst_12 {dimension_numbers = #tpu.dot_dimension_numbers<[1], [0], [0], [1], [0, 0, 1, 1], [], []>} : vector<16x32xf32>, vector<32x256xf32>, vector<16x256xf32> -> vector<16x256xf32>
    %c0_13 = arith.constant 0 : index
    %c0_14 = arith.constant 0 : index
    %15 = vector.load %arg7[%c0_13, %c0_14] : memref<1x256xf32, #tpu.memory_space<vmem>>, vector<1x256xf32>
    %16 = vector.broadcast %15 : vector<1x256xf32> to vector<16x256xf32>
    %17 = arith.addf %14, %16 : vector<16x256xf32>
    %18 = vector.extract_strided_slice %17 {offsets = [0, 0], sizes = [16, 128], strides = [1, 1]} : vector<16x256xf32> to vector<16x128xf32>
    %cst_15 = arith.constant dense<0xFF800000> : vector<16xf32>
    %19 = vector.multi_reduction <maximumf>, %18, %cst_15 [1] : vector<16x128xf32> to vector<16xf32>
    %20 = vector.shape_cast %19 : vector<16xf32> to vector<16x1xf32>
    %21 = tpu.iota {dimensions = array<i32: 1>} : vector<16x128xi32>
    %22 = vector.broadcast %20 : vector<16x1xf32> to vector<16x128xf32>
    %23 = arith.cmpf oeq, %18, %22 : vector<16x128xf32>
    %c128_i32 = arith.constant 128 : i32
    %24 = vector.broadcast %c128_i32 : i32 to vector<16x128xi32>
    %25 = arith.select %23, %21, %24 : vector<16x128xi1>, vector<16x128xi32>
    %cst_16 = arith.constant dense<2147483647> : vector<16xi32>
    %26 = vector.multi_reduction <minsi>, %25, %cst_16 [1] : vector<16x128xi32> to vector<16xi32>
    %27 = vector.shape_cast %26 : vector<16xi32> to vector<16x1xi32>
    %28 = arith.sitofp %27 : vector<16x1xi32> to vector<16x1xf32>
    %cst_17 = arith.constant 0.857142865 : f32
    %29 = vector.broadcast %cst_17 : f32 to vector<16x1xf32>
    %30 = arith.mulf %28, %29 : vector<16x1xf32>
    %cst_18 = arith.constant -6.000000e+00 : f32
    %31 = vector.broadcast %cst_18 : f32 to vector<16x1xf32>
    %32 = arith.addf %31, %30 : vector<16x1xf32>
    %33 = vector.extract_strided_slice %17 {offsets = [0, 128], sizes = [16, 128], strides = [1, 1]} : vector<16x256xf32> to vector<16x128xf32>
    %cst_19 = arith.constant dense<0xFF800000> : vector<16xf32>
    %34 = vector.multi_reduction <maximumf>, %33, %cst_19 [1] : vector<16x128xf32> to vector<16xf32>
    %35 = vector.shape_cast %34 : vector<16xf32> to vector<16x1xf32>
    %36 = tpu.iota {dimensions = array<i32: 1>} : vector<16x128xi32>
    %37 = vector.broadcast %35 : vector<16x1xf32> to vector<16x128xf32>
    %38 = arith.cmpf oeq, %33, %37 : vector<16x128xf32>
    %c128_i32_20 = arith.constant 128 : i32
    %39 = vector.broadcast %c128_i32_20 : i32 to vector<16x128xi32>
    %40 = arith.select %38, %36, %39 : vector<16x128xi1>, vector<16x128xi32>
    %cst_21 = arith.constant dense<2147483647> : vector<16xi32>
    %41 = vector.multi_reduction <minsi>, %40, %cst_21 [1] : vector<16x128xi32> to vector<16xi32>
    %42 = vector.shape_cast %41 : vector<16xi32> to vector<16x1xi32>
    %43 = arith.sitofp %42 : vector<16x1xi32> to vector<16x1xf32>
    %cst_22 = arith.constant 0.0341463424 : f32
    %44 = vector.broadcast %cst_22 : f32 to vector<16x1xf32>
    %45 = arith.mulf %43, %44 : vector<16x1xf32>
    %cst_23 = arith.constant -0.699999988 : f32
    %46 = vector.broadcast %cst_23 : f32 to vector<16x1xf32>
    %47 = arith.addf %46, %45 : vector<16x1xf32>
    %48 = tpu.concatenate %27, %42 in 1 : vector<16x1xi32>, vector<16x1xi32> -> vector<16x2xi32>
    %c0_24 = arith.constant 0 : index
    %c0_25 = arith.constant 0 : index
    %49 = vector.load %arg8[%c0_24, %c0_25] : memref<16x2xi32, #tpu.memory_space<vmem>>, vector<16x2xi32>
    tpu.vector_store %arg8[%c0_24, %c0_25], %48 {strides = array<i32>} : memref<16x2xi32, #tpu.memory_space<vmem>>, vector<16x2xi32>,
    %50 = tpu.concatenate %32, %47 in 1 : vector<16x1xf32>, vector<16x1xf32> -> vector<16x2xf32>
    %c0_26 = arith.constant 0 : index
    %c0_27 = arith.constant 0 : index
    %51 = vector.load %arg9[%c0_26, %c0_27] : memref<16x2xf32, #tpu.memory_space<vmem>>, vector<16x2xf32>
    tpu.vector_store %arg9[%c0_26, %c0_27], %50 {strides = array<i32>} : memref<16x2xf32, #tpu.memory_space<vmem>>, vector<16x2xf32>,
    return
  }
  func.func @transform_0(%arg0: i32) -> (i32, i32) {
    %c0_i32 = arith.constant 0 : i32
    %c0_i32_0 = arith.constant 0 : i32
    return %arg0, %c0_i32 : i32, i32
  }
  func.func @transform_1(%arg0: i32) -> (i32, i32) {
    %c0_i32 = arith.constant 0 : i32
    %c0_i32_0 = arith.constant 0 : i32
    %c0_i32_1 = arith.constant 0 : i32
    return %c0_i32, %c0_i32_0 : i32, i32
  }
  func.func @transform_2(%arg0: i32) -> (i32, i32) {
    %c0_i32 = arith.constant 0 : i32
    %c0_i32_0 = arith.constant 0 : i32
    %c0_i32_1 = arith.constant 0 : i32
    return %c0_i32, %c0_i32_0 : i32, i32
  }
  func.func @transform_3(%arg0: i32) -> (i32, i32) {
    %c0_i32 = arith.constant 0 : i32
    %c0_i32_0 = arith.constant 0 : i32
    %c0_i32_1 = arith.constant 0 : i32
    return %c0_i32, %c0_i32_0 : i32, i32
  }
  func.func @transform_4(%arg0: i32) -> (i32, i32) {
    %c0_i32 = arith.constant 0 : i32
    %c0_i32_0 = arith.constant 0 : i32
    %c0_i32_1 = arith.constant 0 : i32
    return %c0_i32, %c0_i32_0 : i32, i32
  }
  func.func @transform_5(%arg0: i32) -> (i32, i32) {
    %c0_i32 = arith.constant 0 : i32
    %c0_i32_0 = arith.constant 0 : i32
    %c0_i32_1 = arith.constant 0 : i32
    return %c0_i32, %c0_i32_0 : i32, i32
  }
  func.func @transform_6(%arg0: i32) -> (i32, i32) {
    %c0_i32 = arith.constant 0 : i32
    %c0_i32_0 = arith.constant 0 : i32
    %c0_i32_1 = arith.constant 0 : i32
    return %c0_i32, %c0_i32_0 : i32, i32
  }
  func.func @transform_7(%arg0: i32) -> (i32, i32) {
    %c0_i32 = arith.constant 0 : i32
    %c0_i32_0 = arith.constant 0 : i32
    return %arg0, %c0_i32 : i32, i32
  }
  func.func @transform_8(%arg0: i32) -> (i32, i32) {
    %c0_i32 = arith.constant 0 : i32
    %c0_i32_0 = arith.constant 0 : i32
    return %arg0, %c0_i32 : i32, i32
  }
}

</mosaic_0001>

<llo_original>
// kernel: tpu_custom_call.1
$region0: #{tpu_custom_call.1}
  #allocation0 [shape = 'u32[]', space=smem, size = 0x4, offset = 0x4, fixed_abs, tag = 'smem constant byte address 0x4 - core index']
  #allocation1 [shape = 'u32[144,128]{1,0:T(1,128)}', space=vmem, size = 0x12000, scoped, tag = 'internal scratch']
  %s0 = inlined_call_operand.hbm [shape: f32[16,16], index: 0, kind: input, shape index: {}]
  %s1 = inlined_call_operand.hbm [shape: f32[16,32], index: 1, kind: input, shape index: {}]
  %s2 = inlined_call_operand.vmem [shape: f32[1,32], index: 2, kind: input, shape index: {}]
  %s3 = inlined_call_operand.hbm [shape: f32[32,32], index: 3, kind: input, shape index: {}]
  %s4 = inlined_call_operand.vmem [shape: f32[1,32], index: 4, kind: input, shape index: {}]
  %s5 = inlined_call_operand.hbm [shape: f32[32,256], index: 5, kind: input, shape index: {}]
  %s6 = inlined_call_operand.vmem [shape: f32[1,256], index: 6, kind: input, shape index: {}]
  %s7 = inlined_call_operand.vmem [shape: s32[16,2], index: 7, kind: output, shape index: {0}]
  %s8 = inlined_call_operand.vmem [shape: f32[16,2], index: 8, kind: output, shape index: {1}]
  %9 = xla_tuple %s7, %s8
  %s10 = sld [smem:[#allocation0]]
  $region62: #{tpu_custom_call.1} parent=0
    _
  %s12 = ssub.s32 1, %s10
  %s13 = scalar_select 0, %s12, %s10
  $region1: #{tpu_custom_call.1} parent=0
    #allocation2 [shape = 'u8[8192]{0}', space=vmem, size = 0x2000, scoped, tag = 'input window, operand 0, single buffered']
    #allocation3 [shape = 's32[1]{0}', space=sflag, size = 0x4, scoped, tag = 'scoped memory for tpu_custom_call.1']
    #allocation4 [shape = 'u8[8192]{0}', space=vmem, size = 0x2000, scoped, tag = 'input window, operand 1, single buffered']
    #allocation5 [shape = 's32[1]{0}', space=sflag, size = 0x4, scoped, tag = 'scoped memory for tpu_custom_call.1']
    #allocation6 [shape = 'u8[16384]{0}', space=vmem, size = 0x4000, scoped, tag = 'input window, operand 3, single buffered']
    #allocation7 [shape = 'u8[32768]{0}', space=vmem, size = 0x8000, scoped, tag = 'input window, operand 5, single buffered']
    #allocation8 [shape = 's32[1]{0}', space=sflag, size = 0x4, scoped, tag = 'scoped memory for tpu_custom_call.1']
    %14 = vsyncpa [#allocation3], 0
    %15 = vsyncpa [#allocation5], 0
    %16 = vsyncpa [#allocation8], 0
    // Predicated region
    $region2: #{tpu_custom_call.1} parent=1 // pred_check
      _
    $region3: #{tpu_custom_call.1} parent=1 // pred_check_branch
      %18 = sbr.rel (0) target = $region5
    $region4: #{tpu_custom_call.1} parent=1 // pred_region
      %s20 = ssub.s32 256, 256
      %21 = vsyncadd [#allocation3], %s20
      %s22 = sshll.u32 [#allocation2], 4
      %s23 = int_to_ptr.vmem [resolvable:$true] %s22
      %28 = dma.hbm_to_vmem [thread:$0]  %s0, 256, %s23, [#allocation3], 128, 128, 8
    $region5: #{tpu_custom_call.1} parent=1 // pred_fallthru
      _
    // Predicated region
    $region6: #{tpu_custom_call.1} parent=1 // pred_check
      _
    $region7: #{tpu_custom_call.1} parent=1 // pred_check_branch
      %30 = sbr.rel (0) target = $region9
    $region8: #{tpu_custom_call.1} parent=1 // pred_region
      %s32 = ssub.s32 256, 256
      %33 = vsyncadd [#allocation5], %s32
      %s34 = sshll.u32 [#allocation4], 4
      %s35 = int_to_ptr.vmem [resolvable:$true] %s34
      %40 = dma.hbm_to_vmem [thread:$0]  %s1, 256, %s35, [#allocation5], 128, 128, 8
    $region9: #{tpu_custom_call.1} parent=1 // pred_fallthru
      _
    // Predicated region
    $region10: #{tpu_custom_call.1} parent=1 // pred_check
      _
    $region11: #{tpu_custom_call.1} parent=1 // pred_check_branch
      %42 = sbr.rel (0) target = $region13
    $region12: #{tpu_custom_call.1} parent=1 // pred_region
      _
    $region13: #{tpu_custom_call.1} parent=1 // pred_fallthru
      _
    // Predicated region
    $region14: #{tpu_custom_call.1} parent=1 // pred_check
      _
    $region15: #{tpu_custom_call.1} parent=1 // pred_check_branch
      %44 = sbr.rel (0) target = $region17
    $region16: #{tpu_custom_call.1} parent=1 // pred_region
      %s46 = ssub.s32 512, 512
      %47 = vsyncadd [#allocation5], %s46
      %s48 = sshll.u32 [#allocation6], 4
      %s49 = int_to_ptr.vmem [resolvable:$true] %s48
      %54 = dma.hbm_to_vmem [thread:$0]  %s3, 512, %s49, [#allocation5], 128, 128, 8
    $region17: #{tpu_custom_call.1} parent=1 // pred_fallthru
      _
    // Predicated region
    $region18: #{tpu_custom_call.1} parent=1 // pred_check
      _
    $region19: #{tpu_custom_call.1} parent=1 // pred_check_branch
      %56 = sbr.rel (0) target = $region21
    $region20: #{tpu_custom_call.1} parent=1 // pred_region
      _
    $region21: #{tpu_custom_call.1} parent=1 // pred_fallthru
      _
    // Predicated region
    $region22: #{tpu_custom_call.1} parent=1 // pred_check
      _
    $region23: #{tpu_custom_call.1} parent=1 // pred_check_branch
      %58 = sbr.rel (0) target = $region25
    $region24: #{tpu_custom_call.1} parent=1 // pred_region
      %s60 = ssub.s32 1024, 1024
      %61 = vsyncadd [#allocation8], %s60
      %s62 = sshll.u32 [#allocation7], 4
      %s63 = int_to_ptr.vmem [resolvable:$true] %s62
      %68 = dma.hbm_to_vmem [thread:$0]  %s5, 1024, %s63, [#allocation8], 256, 256, 16
    $region25: #{tpu_custom_call.1} parent=1 // pred_fallthru
      _
    // Predicated region
    $region26: #{tpu_custom_call.1} parent=1 // pred_check
      _
    $region27: #{tpu_custom_call.1} parent=1 // pred_check_branch
      %70 = sbr.rel (0) target = $region29
    $region28: #{tpu_custom_call.1} parent=1 // pred_region
      _
    $region29: #{tpu_custom_call.1} parent=1 // pred_fallthru
      _
    // Predicated region
    $region30: #{tpu_custom_call.1} parent=1 // pred_check
      _
    $region31: #{tpu_custom_call.1} parent=1 // pred_check_branch
      %72 = sbr.rel (0) target = $region33
    $region32: #{tpu_custom_call.1} parent=1 // pred_region
      %73 = dma.done [#allocation3], 256
    $region33: #{tpu_custom_call.1} parent=1 // pred_fallthru
      _
    // Predicated region
    $region34: #{tpu_custom_call.1} parent=1 // pred_check
      _
    $region35: #{tpu_custom_call.1} parent=1 // pred_check_branch
      %75 = sbr.rel (0) target = $region37
    $region36: #{tpu_custom_call.1} parent=1 // pred_region
      %76 = dma.done [#allocation5], 256
    $region37: #{tpu_custom_call.1} parent=1 // pred_fallthru
      _
    // Predicated region
    $region38: #{tpu_custom_call.1} parent=1 // pred_check
      _
    $region39: #{tpu_custom_call.1} parent=1 // pred_check_branch
      %78 = sbr.rel (0) target = $region41
    $region40: #{tpu_custom_call.1} parent=1 // pred_region
      %79 = dma.done [#allocation5], 512
    $region41: #{tpu_custom_call.1} parent=1 // pred_fallthru
      _
    // Predicated region
    $region42: #{tpu_custom_call.1} parent=1 // pred_check
      _
    $region43: #{tpu_custom_call.1} parent=1 // pred_check_branch
      %81 = sbr.rel (0) target = $region45
    $region44: #{tpu_custom_call.1} parent=1 // pred_region
      %82 = dma.done [#allocation8], 1024
    $region45: #{tpu_custom_call.1} parent=1 // pred_fallthru
      _
    %v83 = vld [vmem:[#allocation2] sm:$0xff]
    %v84 = vld [vmem:[#allocation2 + $0x8] sm:$0xff]
    %v85 = vld [vmem:[#allocation4] sm:$0xff]
    %v86 = vld [vmem:[#allocation4 + $0x8] sm:$0xff]
    %v87 = vld [vmem:[%s2] sm:$0x1]
    %v89 = vlaneseq
    %v90 = vshrl.u32 %v89, 7
    %v91 = vsub.s32 0, %v90
    %v92 = vrot.slane %v87, %v91
    %vm94 = vcmask 130048
    %v96 = vsel %vm94, %v83, 0
    %v99 = vsel %vm94, %v84, 0
    %101 = vmatprep.subr.mxu0 0.0
    %102 = vmatpush1.msra.mxu0 %v85
    %103 = vmatprep.subr.mxu0 0.0
    %104 = vmatpush1.msra.mxu0 %v86
    %105 = vmatprep.subr.mxu0 0.0
    %106 = vmatpush1.msra.mxu0 0.0
    %107 = vmatprep.subr.mxu0 0.0
    %108 = vmatpush1.msra.mxu0 0.0
    %109 = vmatprep.subr.mxu0 0.0
    %110 = vmatpush1.msra.mxu0 0.0
    %111 = vmatprep.subr.mxu0 0.0
    %112 = vmatpush1.msra.mxu0 0.0
    %113 = vmatprep.subr.mxu0 0.0
    %114 = vmatpush1.msra.mxu0 0.0
    %115 = vmatprep.subr.mxu0 0.0
    %116 = vmatpush1.msra.mxu0 0.0
    %117 = vmatprep.subr.mxu0 0.0
    %118 = vmatpush1.msra.mxu0 0.0
    %119 = vmatprep.subr.mxu0 0.0
    %120 = vmatpush1.msra.mxu0 0.0
    %121 = vmatprep.subr.mxu0 0.0
    %122 = vmatpush1.msra.mxu0 0.0
    %123 = vmatprep.subr.mxu0 0.0
    %124 = vmatpush1.msra.mxu0 0.0
    %125 = vmatprep.subr.mxu0 0.0
    %126 = vmatpush1.msra.mxu0 0.0
    %127 = vmatprep.subr.mxu0 0.0
    %128 = vmatpush1.msra.mxu0 0.0
    %129 = vmatprep.subr.mxu0 0.0
    %130 = vmatpush1.msra.mxu0 0.0
    %131 = vmatprep.subr.mxu0 0.0
    %132 = vmatpush1.msra.mxu0 0.0
    %133 = vmatprep.subr.mxu0 0.0
    %134 = vmatpush1.msra.mxu0 0.0
    %135 = vmatprep.subr.mxu0 0.0
    %136 = vmatpush1.msra.mxu0 0.0
    %137 = vmatprep.subr.mxu0 0.0
    %138 = vmatpush1.msra.mxu0 0.0
    %139 = vmatprep.subr.mxu0 0.0
    %140 = vmatpush1.msra.mxu0 0.0
    %141 = vmatprep.subr.mxu0 0.0
    %142 = vmatpush1.msra.mxu0 0.0
    %143 = vmatprep.subr.mxu0 0.0
    %144 = vmatpush1.msra.mxu0 0.0
    %145 = vmatprep.subr.mxu0 0.0
    %146 = vmatpush1.msra.mxu0 0.0
    %147 = vmatprep.subr.mxu0 0.0
    %148 = vmatpush1.msra.mxu0 0.0
    %149 = vmatprep.subr.mxu0 0.0
    %150 = vmatpush1.msra.mxu0 0.0
    %151 = vmatprep.subr.mxu0 0.0
    %152 = vmatpush1.msra.mxu0 0.0
    %153 = vmatprep.subr.mxu0 0.0
    %154 = vmatpush1.msra.mxu0 0.0
    %155 = vmatprep.subr.mxu0 0.0
    %156 = vmatpush1.msra.mxu0 0.0
    %157 = vmatprep.subr.mxu0 0.0
    %158 = vmatpush1.msra.mxu0 0.0
    %159 = vmatprep.subr.mxu0 0.0
    %160 = vmatpush1.msra.mxu0 0.0
    %161 = vmatprep.subr.mxu0 0.0
    %162 = vmatpush1.msra.mxu0 0.0
    %163 = vmatprep.subr.mxu0 0.0
    %164 = vmatpush1.msra.mxu0 0.0
    %165 = vmatprep.mubr.f32.mxu0 0.0
    %166 = vmatmul.mubr.f32.gmra.mrb[0].mxu0 %v96
    %v167 = vpop.f32.mrb[0].mxu0
    %v168 = vadd.f32 %v92, %v167
    %v169 = vpop.f32.mrb[0].mxu0
    %170 = vmatprep.mubr.f32.mxu0 0.0
    %171 = vmatmul.mubr.f32.gmra.mrb[0].mxu0 %v99
    %v172 = vpop.f32.mrb[0].mxu0
    %v173 = vadd.f32 %v92, %v172
    %v174 = vpop.f32.mrb[0].mxu0
    %175 = vdwg.mxu0
    %v176 = vtanh.pop %v168
    %v177 = vtanh.pop %v173
    %v178 = vld [vmem:[#allocation6] sm:$0xff]
    %v179 = vld [vmem:[#allocation6 + $0x8] sm:$0xff]
    %v180 = vld [vmem:[#allocation6 + $0x10] sm:$0xff]
    %v181 = vld [vmem:[#allocation6 + $0x18] sm:$0xff]
    %v182 = vld [vmem:[%s4] sm:$0x1]
    %v184 = vlaneseq
    %v185 = vshrl.u32 %v184, 7
    %v186 = vsub.s32 0, %v185
    %v187 = vrot.slane %v182, %v186
    %vm189 = vcmask 261120
    %v191 = vsel %vm189, %v176, 0
    %v194 = vsel %vm189, %v177, 0
    %196 = vmatprep.subr.mxu0 0.0
    %197 = vmatpush1.msra.mxu0 %v178
    %198 = vmatprep.subr.mxu0 0.0
    %199 = vmatpush1.msra.mxu0 %v179
    %200 = vmatprep.subr.mxu0 0.0
    %201 = vmatpush1.msra.mxu0 %v180
    %202 = vmatprep.subr.mxu0 0.0
    %203 = vmatpush1.msra.mxu0 %v181
    %204 = vmatprep.subr.mxu0 0.0
    %205 = vmatpush1.msra.mxu0 0.0
    %206 = vmatprep.subr.mxu0 0.0
    %207 = vmatpush1.msra.mxu0 0.0
    %208 = vmatprep.subr.mxu0 0.0
    %209 = vmatpush1.msra.mxu0 0.0
    %210 = vmatprep.subr.mxu0 0.0
    %211 = vmatpush1.msra.mxu0 0.0
    %212 = vmatprep.subr.mxu0 0.0
    %213 = vmatpush1.msra.mxu0 0.0
    %214 = vmatprep.subr.mxu0 0.0
    %215 = vmatpush1.msra.mxu0 0.0
    %216 = vmatprep.subr.mxu0 0.0
    %217 = vmatpush1.msra.mxu0 0.0
    %218 = vmatprep.subr.mxu0 0.0
    %219 = vmatpush1.msra.mxu0 0.0
    %220 = vmatprep.subr.mxu0 0.0
    %221 = vmatpush1.msra.mxu0 0.0
    %222 = vmatprep.subr.mxu0 0.0
    %223 = vmatpush1.msra.mxu0 0.0
    %224 = vmatprep.subr.mxu0 0.0
    %225 = vmatpush1.msra.mxu0 0.0
    %226 = vmatprep.subr.mxu0 0.0
    %227 = vmatpush1.msra.mxu0 0.0
    %228 = vmatprep.subr.mxu0 0.0
    %229 = vmatpush1.msra.mxu0 0.0
    %230 = vmatprep.subr.mxu0 0.0
    %231 = vmatpush1.msra.mxu0 0.0
    %232 = vmatprep.subr.mxu0 0.0
    %233 = vmatpush1.msra.mxu0 0.0
    %234 = vmatprep.subr.mxu0 0.0
    %235 = vmatpush1.msra.mxu0 0.0
    %236 = vmatprep.subr.mxu0 0.0
    %237 = vmatpush1.msra.mxu0 0.0
    %238 = vmatprep.subr.mxu0 0.0
    %239 = vmatpush1.msra.mxu0 0.0
    %240 = vmatprep.subr.mxu0 0.0
    %241 = vmatpush1.msra.mxu0 0.0
    %242 = vmatprep.subr.mxu0 0.0
    %243 = vmatpush1.msra.mxu0 0.0
    %244 = vmatprep.subr.mxu0 0.0
    %245 = vmatpush1.msra.mxu0 0.0
    %246 = vmatprep.subr.mxu0 0.0
    %247 = vmatpush1.msra.mxu0 0.0
    %248 = vmatprep.subr.mxu0 0.0
    %249 = vmatpush1.msra.mxu0 0.0
    %250 = vmatprep.subr.mxu0 0.0
    %251 = vmatpush1.msra.mxu0 0.0
    %252 = vmatprep.subr.mxu0 0.0
    %253 = vmatpush1.msra.mxu0 0.0
    %254 = vmatprep.subr.mxu0 0.0
    %255 = vmatpush1.msra.mxu0 0.0
    %256 = vmatprep.subr.mxu0 0.0
    %257 = vmatpush1.msra.mxu0 0.0
    %258 = vmatprep.subr.mxu0 0.0
    %259 = vmatpush1.msra.mxu0 0.0
    %260 = vmatprep.mubr.f32.mxu0 0.0
    %261 = vmatmul.mubr.f32.gmra.mrb[0].mxu0 %v191
    %v262 = vpop.f32.mrb[0].mxu0
    %v263 = vadd.f32 %v187, %v262
    %v264 = vpop.f32.mrb[0].mxu0
    %265 = vmatprep.mubr.f32.mxu0 0.0
    %266 = vmatmul.mubr.f32.gmra.mrb[0].mxu0 %v194
    %v267 = vpop.f32.mrb[0].mxu0
    %v268 = vadd.f32 %v187, %v267
    %v269 = vpop.f32.mrb[0].mxu0
    %270 = vdwg.mxu0
    %v271 = vtanh.pop %v263
    %v272 = vtanh.pop %v268
    %v273 = vld [vmem:[#allocation7] sm:$0xff]
    %v274 = vld [vmem:[#allocation7 + $0x8] sm:$0xff]
    %v275 = vld [vmem:[#allocation7 + $0x10] sm:$0xff]
    %v276 = vld [vmem:[#allocation7 + $0x18] sm:$0xff]
    %v277 = vld [vmem:[#allocation7 + $0x20] sm:$0xff]
    %v278 = vld [vmem:[#allocation7 + $0x28] sm:$0xff]
    %v279 = vld [vmem:[#allocation7 + $0x30] sm:$0xff]
    %v280 = vld [vmem:[#allocation7 + $0x38] sm:$0xff]
    %v281 = vld [vmem:[%s6] sm:$0x3]
    %v283 = vlaneseq
    %v284 = vshrl.u32 %v283, 7
    %v285 = vsub.s32 0, %v284
    %v286 = vrot.slane %v281, %v285
    %v287 = vlaneseq
    %v288 = vshrl.u32 %v287, 7
    %v289 = vsub.s32 1, %v288
    %v290 = vrot.slane %v281, %v289
    %v294 = vsel %vm189, %v271, 0
    %v297 = vsel %vm189, %v272, 0
    %299 = vmatprep.subr.mxu0 %v274
    %300 = vmatpush1.msra.mxu0 %v273
    %301 = vmatprep.subr.mxu0 %v276
    %302 = vmatpush1.msra.mxu0 %v275
    %303 = vmatprep.subr.mxu0 %v278
    %304 = vmatpush1.msra.mxu0 %v277
    %305 = vmatprep.subr.mxu0 %v280
    %306 = vmatpush1.msra.mxu0 %v279
    %307 = vmatprep.subr.mxu0 0.0
    %308 = vmatpush1.msra.mxu0 0.0
    %309 = vmatprep.subr.mxu0 0.0
    %310 = vmatpush1.msra.mxu0 0.0
    %311 = vmatprep.subr.mxu0 0.0
    %312 = vmatpush1.msra.mxu0 0.0
    %313 = vmatprep.subr.mxu0 0.0
    %314 = vmatpush1.msra.mxu0 0.0
    %315 = vmatprep.subr.mxu0 0.0
    %316 = vmatpush1.msra.mxu0 0.0
    %317 = vmatprep.subr.mxu0 0.0
    %318 = vmatpush1.msra.mxu0 0.0
    %319 = vmatprep.subr.mxu0 0.0
    %320 = vmatpush1.msra.mxu0 0.0
    %321 = vmatprep.subr.mxu0 0.0
    %322 = vmatpush1.msra.mxu0 0.0
    %323 = vmatprep.subr.mxu0 0.0
    %324 = vmatpush1.msra.mxu0 0.0
    %325 = vmatprep.subr.mxu0 0.0
    %326 = vmatpush1.msra.mxu0 0.0
    %327 = vmatprep.subr.mxu0 0.0
    %328 = vmatpush1.msra.mxu0 0.0
    %329 = vmatprep.subr.mxu0 0.0
    %330 = vmatpush1.msra.mxu0 0.0
    %331 = vmatprep.subr.mxu0 0.0
    %332 = vmatpush1.msra.mxu0 0.0
    %333 = vmatprep.subr.mxu0 0.0
    %334 = vmatpush1.msra.mxu0 0.0
    %335 = vmatprep.subr.mxu0 0.0
    %336 = vmatpush1.msra.mxu0 0.0
    %337 = vmatprep.subr.mxu0 0.0
    %338 = vmatpush1.msra.mxu0 0.0
    %339 = vmatprep.subr.mxu0 0.0
    %340 = vmatpush1.msra.mxu0 0.0
    %341 = vmatprep.subr.mxu0 0.0
    %342 = vmatpush1.msra.mxu0 0.0
    %343 = vmatprep.subr.mxu0 0.0
    %344 = vmatpush1.msra.mxu0 0.0
    %345 = vmatprep.subr.mxu0 0.0
    %346 = vmatpush1.msra.mxu0 0.0
    %347 = vmatprep.subr.mxu0 0.0
    %348 = vmatpush1.msra.mxu0 0.0
    %349 = vmatprep.subr.mxu0 0.0
    %350 = vmatpush1.msra.mxu0 0.0
    %351 = vmatprep.subr.mxu0 0.0
    %352 = vmatpush1.msra.mxu0 0.0
    %353 = vmatprep.subr.mxu0 0.0
    %354 = vmatpush1.msra.mxu0 0.0
    %355 = vmatprep.subr.mxu0 0.0
    %356 = vmatpush1.msra.mxu0 0.0
    %357 = vmatprep.subr.mxu0 0.0
    %358 = vmatpush1.msra.mxu0 0.0
    %359 = vmatprep.subr.mxu0 0.0
    %360 = vmatpush1.msra.mxu0 0.0
    %361 = vmatprep.subr.mxu0 0.0
    %362 = vmatpush1.msra.mxu0 0.0
    %363 = vmatprep.mubr.f32.mxu0 0.0
    %364 = vmatmul.mubr.f32.gmra.mrb[0].mxu0 %v294
    %v365 = vpop.f32.mrb[0].mxu0
    %v366 = vadd.f32 %v286, %v365
    %v367 = vpop.f32.mrb[0].mxu0
    %v368 = vadd.f32 %v290, %v367
    %369 = vmatprep.mubr.f32.mxu0 0.0
    %370 = vmatmul.mubr.f32.gmra.mrb[0].mxu0 %v297
    %v371 = vpop.f32.mrb[0].mxu0
    %v372 = vadd.f32 %v286, %v371
    %v373 = vpop.f32.mrb[0].mxu0
    %v374 = vadd.f32 %v290, %v373
    %375 = vdwg.mxu0
    %376 = vmax.xlane.f32.xlu0 %v366
    %v377 = vpop.xlane.xlu0 %376
    %378 = vmax.xlane.f32.xlu0 %v372
    %v379 = vpop.xlane.xlu0 %378
    %v380 = vlaneseq
    %v381 = vand.u32 %v380, 127
    %vm382 = vcmp.eq.f32.partialorder %v366, %v377
    %vm383 = vcmp.eq.f32.partialorder %v372, %v379
    %v384 = vsel %vm382, %v381, 128
    %v385 = vsel %vm383, %v381, 128
    %v386 = vand.u32 %v384, 65535
    %v387 = vshra.s32 %v384, 16
    %v388 = vcvt.s32.f32 %v386
    %v389 = vcvt.s32.f32 %v387
    %390 = vmin.xlane.f32.xlu0 %v389
    %v391 = vpop.xlane.xlu0 %390
    %vm392 = vcmp.eq.f32.partialorder %v389, %v391
    %v393 = vsel %vm392, %v388, inf
    %394 = vmin.xlane.f32.xlu0 %v393
    %v395 = vpop.xlane.xlu0 %394
    %v396 = vcvt.f32.s32 %v395
    %v397 = vcvt.f32.s32 %v391
    %v398 = vshll.u32 %v397, 16
    %v399 = vadd.s32 %v398, %v396
    %v400 = vand.u32 %v385, 65535
    %v401 = vshra.s32 %v385, 16
    %v402 = vcvt.s32.f32 %v400
    %v403 = vcvt.s32.f32 %v401
    %404 = vmin.xlane.f32.xlu0 %v403
    %v405 = vpop.xlane.xlu0 %404
    %vm406 = vcmp.eq.f32.partialorder %v403, %v405
    %v407 = vsel %vm406, %v402, inf
    %408 = vmin.xlane.f32.xlu0 %v407
    %v409 = vpop.xlane.xlu0 %408
    %v410 = vcvt.f32.s32 %v409
    %v411 = vcvt.f32.s32 %v405
    %v412 = vshll.u32 %v411, 16
    %v413 = vadd.s32 %v412, %v410
    %v414 = vcvt.s32.f32 %v399
    %v415 = vcvt.s32.f32 %v413
    %v416 = vmul.f32 %v414, 0.85714287
    %v417 = vmul.f32 %v415, 0.85714287
    %v418 = vadd.f32 %v416, -6.0
    %v419 = vadd.f32 %v417, -6.0
    %420 = vmax.xlane.f32.xlu0 %v368
    %v421 = vpop.xlane.xlu0 %420
    %422 = vmax.xlane.f32.xlu0 %v374
    %v423 = vpop.xlane.xlu0 %422
    %vm424 = vcmp.eq.f32.partialorder %v368, %v421
    %vm425 = vcmp.eq.f32.partialorder %v374, %v423
    %v426 = vsel %vm424, %v381, 128
    %v427 = vsel %vm425, %v381, 128
    %v428 = vand.u32 %v426, 65535
    %v429 = vshra.s32 %v426, 16
    %v430 = vcvt.s32.f32 %v428
    %v431 = vcvt.s32.f32 %v429
    %432 = vmin.xlane.f32.xlu0 %v431
    %v433 = vpop.xlane.xlu0 %432
    %vm434 = vcmp.eq.f32.partialorder %v431, %v433
    %v435 = vsel %vm434, %v430, inf
    %436 = vmin.xlane.f32.xlu0 %v435
    %v437 = vpop.xlane.xlu0 %436
    %v438 = vcvt.f32.s32 %v437
    %v439 = vcvt.f32.s32 %v433
    %v440 = vshll.u32 %v439, 16
    %v441 = vadd.s32 %v440, %v438
    %v442 = vand.u32 %v427, 65535
    %v443 = vshra.s32 %v427, 16
    %v444 = vcvt.s32.f32 %v442
    %v445 = vcvt.s32.f32 %v443
    %446 = vmin.xlane.f32.xlu0 %v445
    %v447 = vpop.xlane.xlu0 %446
    %vm448 = vcmp.eq.f32.partialorder %v445, %v447
    %v449 = vsel %vm448, %v444, inf
    %450 = vmin.xlane.f32.xlu0 %v449
    %v451 = vpop.xlane.xlu0 %450
    %v452 = vcvt.f32.s32 %v451
    %v453 = vcvt.f32.s32 %v447
    %v454 = vshll.u32 %v453, 16
    %v455 = vadd.s32 %v454, %v452
    %v456 = vcvt.s32.f32 %v441
    %v457 = vcvt.s32.f32 %v455
    %v458 = vmul.f32 %v456, 0.034146342
    %v459 = vmul.f32 %v457, 0.034146342
    %v460 = vadd.f32 %v458, -0.7
    %v461 = vadd.f32 %v459, -0.7
    %vm462 = vcmask 7168
    %v463 = vsel %vm462, %v399, %v441
    %v464 = vsel %vm462, %v413, %v455
    %vm465 = vcmask 15360
    %466 = vst.msk [vmem:[%s7] sm:$0xff] %vm465, %v463
    %467 = vst.msk [vmem:[%s7 + $0x8] sm:$0xff] %vm465, %v464
    %v468 = vsel %vm462, %v418, %v460
    %v469 = vsel %vm462, %v419, %v461
    %470 = vst.msk [vmem:[%s8] sm:$0xff] %vm465, %v468
    %471 = vst.msk [vmem:[%s8 + $0x8] sm:$0xff] %vm465, %v469
    // Predicated region
    $region46: #{tpu_custom_call.1} parent=1 // pred_check
      _
    $region47: #{tpu_custom_call.1} parent=1 // pred_check_branch
      %473 = sbr.rel (0) target = $region49
    $region48: #{tpu_custom_call.1} parent=1 // pred_region
      _
    $region49: #{tpu_custom_call.1} parent=1 // pred_fallthru
      _
    // Predicated region
    $region50: #{tpu_custom_call.1} parent=1 // pred_check
      _
    $region51: #{tpu_custom_call.1} parent=1 // pred_check_branch
      %475 = sbr.rel (0) target = $region53
    $region52: #{tpu_custom_call.1} parent=1 // pred_region
      _
    $region53: #{tpu_custom_call.1} parent=1 // pred_fallthru
      _
    // Predicated region
    $region54: #{tpu_custom_call.1} parent=1 // pred_check
      _
    $region55: #{tpu_custom_call.1} parent=1 // pred_check_branch
      %477 = sbr.rel (0) target = $region57
    $region56: #{tpu_custom_call.1} parent=1 // pred_region
      _
    $region57: #{tpu_custom_call.1} parent=1 // pred_fallthru
      _
    // Predicated region
    $region58: #{tpu_custom_call.1} parent=1 // pred_check
      _
    $region59: #{tpu_custom_call.1} parent=1 // pred_check_branch
      %479 = sbr.rel (0) target = $region61
    $region60: #{tpu_custom_call.1} parent=1 // pred_region
      _
    $region61: #{tpu_custom_call.1} parent=1 // pred_fallthru
      _
    %480 = vsyncpa [#allocation3], 1
    %481 = vsyncpa [#allocation5], 1
    %482 = vsyncpa [#allocation8], 1

</llo_original>
